<compile_context>
chip_gen: v7x
topology: tpu7x:2x2x1
jax: 0.10.0
libtpu: 0.0.40
codegen_flags: <defaults>
</compile_context>

<pallas_src>
import numpy as np
import jax
import jax.numpy as jnp
from jax import lax
from jax.experimental import pallas as pl
from jax.experimental.pallas import tpu as pltpu


C1 = 16    # conv1 out channels
C2 = 32    # conv2 out channels
KW = 3     # conv kernel width
NOUT = 2   # fc out features


def make_cnn_kernel(T: int):
    """Kernel specialized for a static time length T."""
    Tp2 = T + 2

    def kernel(x_ref, w1_ref, b1_ref, w2_ref, b2_ref, fc_ref, o_ref):
        # x_ref : (B, T+4, 1)   input in NWC, time axis zero-padded by 2
        # w1_ref: (3, 1, 16)    conv1 taps,  w1_ref[k, 0, c] = w1[c, 0, k]
        # b1_ref: (1, 16)
        # w2_ref: (32, 48)      conv2 weight, w2_ref[o, k*16 + c] = w2[o, c, k]
        # b2_ref: (1, 32)
        # fc_ref: (2, 32*T)     fc weight with columns permuted to order t*32 + c
        # o_ref : (B, 1, 2)
        x = x_ref[...]
        B = x.shape[0]
        f32 = jnp.float32

        # ---- conv1 (1 -> 16, k=3, pad=1) + ReLU -----------------------------
        # Computed on the extended range t = -1 .. T (T+2 positions) so that
        # conv2's zero padding is obtained by masking the two boundary rows.
        h1 = (w1_ref[0] * x[:, 0:Tp2, :]
              + w1_ref[1] * x[:, 1:Tp2 + 1, :]
              + w1_ref[2] * x[:, 2:Tp2 + 2, :]) + b1_ref[...]
        h1 = jnp.maximum(h1, 0.0)                                 # (B, T+2, 16)
        row = lax.broadcasted_iota(jnp.int32, (B, Tp2, C1), 1)
        h1 = jnp.where((row == 0) | (row == Tp2 - 1), 0.0, h1)    # zero halo rows

        # ---- conv2 (16 -> 32, k=3, pad=1) + ReLU: one fused batched matmul --
        # H_cat[b, t, k*16 + c] = h1_padded[b, t + k, c]  (3 taps stacked on lanes)
        h_cat = jnp.concatenate(
            [h1[:, 0:T, :], h1[:, 1:T + 1, :], h1[:, 2:T + 2, :]], axis=2)
        w2b = jnp.broadcast_to(w2_ref[...], (B, C2, KW * C1))     # (B, 32, 48)
        h2 = jnp.einsum('btk,bok->bto', h_cat, w2b,
                        preferred_element_type=f32) + b2_ref[...]
        h2 = jnp.maximum(h2, 0.0)                                 # (B, T, 32)

        # ---- Flatten (lane-dense, 32*T lanes) + FC as a single MXU matmul ---
        h2_flat = jnp.concatenate(
            [h2[:, t:t + 1, :] for t in range(T)], axis=2)        # (B, 1, 32*T)
        fcb = jnp.broadcast_to(fc_ref[...], (B, NOUT, C2 * T))    # (B, 2, 32*T)
        o_ref[...] = jnp.einsum('bqn,bon->bqo', h2_flat, fcb,
                                preferred_element_type=f32)       # (B, 1, 2)

    return kernel


def cnn_forward(x, params):
    """x: (B, 1, T) float32.  params = (w1, b1, w2, b2, fc) in PyTorch layouts."""
    w1, b1, w2, b2, fc = params
    B, _, T = x.shape
    f32 = jnp.float32

    # Layout plumbing (done once in XLA, outside the kernel):
    x_nwc = jnp.pad(jnp.transpose(x, (0, 2, 1)).astype(f32),
                    ((0, 0), (2, 2), (0, 0)))                           # (B, T+4, 1)
    w1r = jnp.transpose(w1, (2, 1, 0)).astype(f32)                      # (3, 1, 16)
    b1r = b1.reshape(1, C1).astype(f32)
    w2r = jnp.transpose(w2, (0, 2, 1)).reshape(C2, KW * C1).astype(f32)  # (32, 48)
    b2r = b2.reshape(1, C2).astype(f32)
    # PyTorch flatten order on NCW is c*T + t; kernel flattens NWC as t*32 + c,
    # so permute the FC columns accordingly (pure weight reindexing, exact).
    fcr = jnp.transpose(fc.reshape(NOUT, C2, T), (0, 2, 1)) \
             .reshape(NOUT, C2 * T).astype(f32)                         # (2, 32*T)

    flops = (2 * B * (T + 2) * C1 * KW          # conv1
             + 2 * B * T * C2 * (KW * C1)       # conv2 fused contraction
             + 2 * B * NOUT * C2 * T)           # fc
    bytes_accessed = 4 * (x_nwc.size + w1r.size + b1r.size + w2r.size
                          + b2r.size + fcr.size + B * NOUT)

    out = pl.pallas_call(
        make_cnn_kernel(T),
        out_shape=jax.ShapeDtypeStruct((B, 1, NOUT), f32),
        in_specs=[pl.BlockSpec(memory_space=pltpu.MemorySpace.VMEM)] * 6,
        out_specs=pl.BlockSpec(memory_space=pltpu.MemorySpace.VMEM),
        cost_estimate=pl.CostEstimate(flops=flops, transcendentals=0,
                                      bytes_accessed=bytes_accessed),
    )(x_nwc, w1r, b1r, w2r, b2r, fcr)
    return out.reshape(B, NOUT)


def ref_forward(x, params):
    """Pure-JAX reference (XLA conv) for verification."""
    w1, b1, w2, b2, fc = params
    dn = ("NCH", "OIH", "NCH")
    y = lax.conv_general_dilated(x, w1, (1,), ((1, 1),), dimension_numbers=dn)
    y = jnp.maximum(y + b1[None, :, None], 0.0)
    y = lax.conv_general_dilated(y, w2, (1,), ((1, 1),), dimension_numbers=dn)
    y = jnp.maximum(y + b2[None, :, None], 0.0)
    y = y.reshape(y.shape[0], -1)                  # (B, 32*T), NCW flatten: c*T + t
    return y @ fc.T


def init_params(key, time_step):
    """Deterministic init mimicking PyTorch default uniform(-1/sqrt(fan_in), ...)."""
    k1, k2, k3, k4, k5 = jax.random.split(key, 5)
    b_c1 = 1.0 / np.sqrt(1 * 3)
    b_c2 = 1.0 / np.sqrt(16 * 3)
    b_fc = 1.0 / np.sqrt(32 * time_step)
    w1 = jax.random.uniform(k1, (16, 1, 3), jnp.float32, -b_c1, b_c1)
    b1 = jax.random.uniform(k2, (16,), jnp.float32, -b_c1, b_c1)
    w2 = jax.random.uniform(k3, (32, 16, 3), jnp.float32, -b_c2, b_c2)
    b2 = jax.random.uniform(k4, (32,), jnp.float32, -b_c2, b_c2)
    fc = jax.random.uniform(k5, (2, 32 * time_step), jnp.float32, -b_fc, b_fc)
    return (w1, b1, w2, b2, fc)


if __name__ == "__main__":
    B = 2
    TIME_STEP = 8        # synthetic time_step for this instance (fc in = 32 * 8)

    key = jax.random.PRNGKey(0)
    kx, kp = jax.random.split(key)
    x = jax.random.normal(kx, (B, 1, TIME_STEP), dtype=jnp.float32)
    params = init_params(kp, TIME_STEP)

    out = jax.block_until_ready(cnn_forward(x, params))
    ref = jax.block_until_ready(ref_forward(x, params))

    assert out.shape == (B, 2)
    np.testing.assert_allclose(np.asarray(out), np.asarray(ref), rtol=1e-4, atol=1e-4)

    print("KERNEL_OK")
</pallas_src>

<mosaic_0001>
module attributes {stable_mosaic.version = 11 : i64} {
  func.func @kernel(%arg0: memref<2x12x1xf32, #tpu.memory_space<vmem>>, %arg1: memref<3x1x16xf32, #tpu.memory_space<vmem>>, %arg2: memref<1x16xf32, #tpu.memory_space<vmem>>, %arg3: memref<32x48xf32, #tpu.memory_space<vmem>>, %arg4: memref<1x32xf32, #tpu.memory_space<vmem>>, %arg5: memref<2x256xf32, #tpu.memory_space<vmem>>, %arg6: memref<2x1x2xf32, #tpu.memory_space<vmem>>) attributes {dimension_semantics = [], scalar_prefetch = 0 : i64, scratch_operands = 0 : i64, tpu.core_type = #tpu.core_type<tc>} {
    %c0 = arith.constant 0 : index
    %c0_0 = arith.constant 0 : index
    %c0_1 = arith.constant 0 : index
    %0 = vector.load %arg0[%c0, %c0_0, %c0_1] : memref<2x12x1xf32, #tpu.memory_space<vmem>>, vector<2x12x1xf32>
    %c0_2 = arith.constant 0 : index
    %c0_3 = arith.constant 0 : index
    %c0_4 = arith.constant 0 : index
    %1 = vector.load %arg1[%c0_2, %c0_3, %c0_4] : memref<3x1x16xf32, #tpu.memory_space<vmem>>, vector<1x1x16xf32>
    %2 = vector.shape_cast %1 : vector<1x1x16xf32> to vector<1x16xf32>
    %3 = vector.extract_strided_slice %0 {offsets = [0, 0, 0], sizes = [2, 10, 1], strides = [1, 1, 1]} : vector<2x12x1xf32> to vector<2x10x1xf32>
    %4 = vector.shape_cast %2 : vector<1x16xf32> to vector<1x1x16xf32>
    %5 = vector.broadcast %4 : vector<1x1x16xf32> to vector<2x10x16xf32>
    %6 = vector.broadcast %3 : vector<2x10x1xf32> to vector<2x10x16xf32>
    %7 = arith.mulf %5, %6 : vector<2x10x16xf32>
    %c1 = arith.constant 1 : index
    %c0_5 = arith.constant 0 : index
    %c0_6 = arith.constant 0 : index
    %8 = vector.load %arg1[%c1, %c0_5, %c0_6] : memref<3x1x16xf32, #tpu.memory_space<vmem>>, vector<1x1x16xf32>
    %9 = vector.shape_cast %8 : vector<1x1x16xf32> to vector<1x16xf32>
    %10 = vector.extract_strided_slice %0 {offsets = [0, 1, 0], sizes = [2, 10, 1], strides = [1, 1, 1]} : vector<2x12x1xf32> to vector<2x10x1xf32>
    %11 = vector.shape_cast %9 : vector<1x16xf32> to vector<1x1x16xf32>
    %12 = vector.broadcast %11 : vector<1x1x16xf32> to vector<2x10x16xf32>
    %13 = vector.broadcast %10 : vector<2x10x1xf32> to vector<2x10x16xf32>
    %14 = arith.mulf %12, %13 : vector<2x10x16xf32>
    %15 = arith.addf %7, %14 : vector<2x10x16xf32>
    %c2 = arith.constant 2 : index
    %c0_7 = arith.constant 0 : index
    %c0_8 = arith.constant 0 : index
    %16 = vector.load %arg1[%c2, %c0_7, %c0_8] : memref<3x1x16xf32, #tpu.memory_space<vmem>>, vector<1x1x16xf32>
    %17 = vector.shape_cast %16 : vector<1x1x16xf32> to vector<1x16xf32>
    %18 = vector.extract_strided_slice %0 {offsets = [0, 2, 0], sizes = [2, 10, 1], strides = [1, 1, 1]} : vector<2x12x1xf32> to vector<2x10x1xf32>
    %19 = vector.shape_cast %17 : vector<1x16xf32> to vector<1x1x16xf32>
    %20 = vector.broadcast %19 : vector<1x1x16xf32> to vector<2x10x16xf32>
    %21 = vector.broadcast %18 : vector<2x10x1xf32> to vector<2x10x16xf32>
    %22 = arith.mulf %20, %21 : vector<2x10x16xf32>
    %23 = arith.addf %15, %22 : vector<2x10x16xf32>
    %c0_9 = arith.constant 0 : index
    %c0_10 = arith.constant 0 : index
    %24 = vector.load %arg2[%c0_9, %c0_10] : memref<1x16xf32, #tpu.memory_space<vmem>>, vector<1x16xf32>
    %25 = vector.shape_cast %24 : vector<1x16xf32> to vector<1x1x16xf32>
    %26 = vector.broadcast %25 : vector<1x1x16xf32> to vector<2x10x16xf32>
    %27 = arith.addf %23, %26 : vector<2x10x16xf32>
    %cst = arith.constant 0.000000e+00 : f32
    %28 = vector.broadcast %cst : f32 to vector<2x10x16xf32>
    %29 = arith.maximumf %27, %28 : vector<2x10x16xf32>
    %30 = tpu.iota {dimensions = array<i32: 1>} : vector<2x10x16xi32>
    %c0_i32 = arith.constant 0 : i32
    %31 = vector.broadcast %c0_i32 : i32 to vector<2x10x16xi32>
    %32 = arith.cmpi eq, %30, %31 : vector<2x10x16xi32>
    %c9_i32 = arith.constant 9 : i32
    %33 = vector.broadcast %c9_i32 : i32 to vector<2x10x16xi32>
    %34 = arith.cmpi eq, %30, %33 : vector<2x10x16xi32>
    %35 = arith.ori %32, %34 : vector<2x10x16xi1>
    %cst_11 = arith.constant 0.000000e+00 : f32
    %36 = vector.broadcast %cst_11 : f32 to vector<2x10x16xf32>
    %37 = arith.select %35, %36, %29 : vector<2x10x16xi1>, vector<2x10x16xf32>
    %38 = vector.extract_strided_slice %37 {offsets = [0, 0, 0], sizes = [2, 8, 16], strides = [1, 1, 1]} : vector<2x10x16xf32> to vector<2x8x16xf32>
    %39 = vector.extract_strided_slice %37 {offsets = [0, 1, 0], sizes = [2, 8, 16], strides = [1, 1, 1]} : vector<2x10x16xf32> to vector<2x8x16xf32>
    %40 = vector.extract_strided_slice %37 {offsets = [0, 2, 0], sizes = [2, 8, 16], strides = [1, 1, 1]} : vector<2x10x16xf32> to vector<2x8x16xf32>
    %41 = tpu.concatenate %38, %39, %40 in 2 : vector<2x8x16xf32>, vector<2x8x16xf32>, vector<2x8x16xf32> -> vector<2x8x48xf32>
    %c0_12 = arith.constant 0 : index
    %c0_13 = arith.constant 0 : index
    %42 = vector.load %arg3[%c0_12, %c0_13] : memref<32x48xf32, #tpu.memory_space<vmem>>, vector<32x48xf32>
    %43 = vector.shape_cast %42 : vector<32x48xf32> to vector<1x32x48xf32>
    %44 = vector.broadcast %43 : vector<1x32x48xf32> to vector<2x32x48xf32>
    "tpu.trace_start"() <{level = 10 : i32, message = "btk,bok->bto"}> : () -> ()
    %cst_14 = arith.constant dense<0.000000e+00> : vector<2x8x32xf32>
    %45 = tpu.matmul %41, %44, %cst_14 {dimension_numbers = #tpu.dot_dimension_numbers<[2], [2], [1], [1], [0, 0, 0, 1, 1, 1], [0], [0]>} : vector<2x8x48xf32>, vector<2x32x48xf32>, vector<2x8x32xf32> -> vector<2x8x32xf32>
    "tpu.trace_stop"() : () -> ()
    %c0_15 = arith.constant 0 : index
    %c0_16 = arith.constant 0 : index
    %46 = vector.load %arg4[%c0_15, %c0_16] : memref<1x32xf32, #tpu.memory_space<vmem>>, vector<1x32xf32>
    %47 = vector.shape_cast %46 : vector<1x32xf32> to vector<1x1x32xf32>
    %48 = vector.broadcast %47 : vector<1x1x32xf32> to vector<2x8x32xf32>
    %49 = arith.addf %45, %48 : vector<2x8x32xf32>
    %cst_17 = arith.constant 0.000000e+00 : f32
    %50 = vector.broadcast %cst_17 : f32 to vector<2x8x32xf32>
    %51 = arith.maximumf %49, %50 : vector<2x8x32xf32>
    %52 = vector.extract_strided_slice %51 {offsets = [0, 0, 0], sizes = [2, 1, 32], strides = [1, 1, 1]} : vector<2x8x32xf32> to vector<2x1x32xf32>
    %53 = vector.extract_strided_slice %51 {offsets = [0, 1, 0], sizes = [2, 1, 32], strides = [1, 1, 1]} : vector<2x8x32xf32> to vector<2x1x32xf32>
    %54 = vector.extract_strided_slice %51 {offsets = [0, 2, 0], sizes = [2, 1, 32], strides = [1, 1, 1]} : vector<2x8x32xf32> to vector<2x1x32xf32>
    %55 = vector.extract_strided_slice %51 {offsets = [0, 3, 0], sizes = [2, 1, 32], strides = [1, 1, 1]} : vector<2x8x32xf32> to vector<2x1x32xf32>
    %56 = vector.extract_strided_slice %51 {offsets = [0, 4, 0], sizes = [2, 1, 32], strides = [1, 1, 1]} : vector<2x8x32xf32> to vector<2x1x32xf32>
    %57 = vector.extract_strided_slice %51 {offsets = [0, 5, 0], sizes = [2, 1, 32], strides = [1, 1, 1]} : vector<2x8x32xf32> to vector<2x1x32xf32>
    %58 = vector.extract_strided_slice %51 {offsets = [0, 6, 0], sizes = [2, 1, 32], strides = [1, 1, 1]} : vector<2x8x32xf32> to vector<2x1x32xf32>
    %59 = vector.extract_strided_slice %51 {offsets = [0, 7, 0], sizes = [2, 1, 32], strides = [1, 1, 1]} : vector<2x8x32xf32> to vector<2x1x32xf32>
    %60 = tpu.concatenate %52, %53, %54, %55, %56, %57, %58, %59 in 2 : vector<2x1x32xf32>, vector<2x1x32xf32>, vector<2x1x32xf32>, vector<2x1x32xf32>, vector<2x1x32xf32>, vector<2x1x32xf32>, vector<2x1x32xf32>, vector<2x1x32xf32> -> vector<2x1x256xf32>
    %c0_18 = arith.constant 0 : index
    %c0_19 = arith.constant 0 : index
    %61 = vector.load %arg5[%c0_18, %c0_19] : memref<2x256xf32, #tpu.memory_space<vmem>>, vector<2x256xf32>
    %62 = vector.shape_cast %61 : vector<2x256xf32> to vector<1x2x256xf32>
    %63 = vector.broadcast %62 : vector<1x2x256xf32> to vector<2x2x256xf32>
    "tpu.trace_start"() <{level = 10 : i32, message = "bqn,bon->bqo"}> : () -> ()
    %cst_20 = arith.constant dense<0.000000e+00> : vector<2x1x2xf32>
    %64 = tpu.matmul %60, %63, %cst_20 {dimension_numbers = #tpu.dot_dimension_numbers<[2], [2], [1], [1], [0, 0, 0, 1, 1, 1], [0], [0]>} : vector<2x1x256xf32>, vector<2x2x256xf32>, vector<2x1x2xf32> -> vector<2x1x2xf32>
    "tpu.trace_stop"() : () -> ()
    %c0_21 = arith.constant 0 : index
    %c0_22 = arith.constant 0 : index
    %c0_23 = arith.constant 0 : index
    %65 = vector.load %arg6[%c0_21, %c0_22, %c0_23] : memref<2x1x2xf32, #tpu.memory_space<vmem>>, vector<2x1x2xf32>
    tpu.vector_store %arg6[%c0_21, %c0_22, %c0_23], %64 {strides = array<i32>} : memref<2x1x2xf32, #tpu.memory_space<vmem>>, vector<2x1x2xf32>,
    return
  }
}

</mosaic_0001>

<llo_original>
// kernel: tpu_custom_call.1
$region0: #{tpu_custom_call.1}
  #allocation0 [shape = 'u32[]', space=smem, size = 0x4, offset = 0x4, fixed_abs, tag = 'smem constant byte address 0x4 - core index']
  #allocation1 [shape = 'u32[144,128]{1,0:T(1,128)}', space=vmem, size = 0x12000, scoped, tag = 'internal scratch']
  %s0 = inlined_call_operand.vmem [shape: f32[2,12,1], index: 0, kind: input, shape index: {}]
  %s1 = inlined_call_operand.vmem [shape: f32[3,1,16], index: 1, kind: input, shape index: {}]
  %s2 = inlined_call_operand.vmem [shape: f32[1,16], index: 2, kind: input, shape index: {}]
  %s3 = inlined_call_operand.vmem [shape: f32[32,48], index: 3, kind: input, shape index: {}]
  %s4 = inlined_call_operand.vmem [shape: f32[1,32], index: 4, kind: input, shape index: {}]
  %s5 = inlined_call_operand.vmem [shape: f32[2,256], index: 5, kind: input, shape index: {}]
  %s6 = inlined_call_operand.hbm [shape: f32[2,1,2], index: 6, kind: output, shape index: {}]
  %s7 = sld [smem:[#allocation0]]
  $region34: #{tpu_custom_call.1} parent=0
    _
  %s9 = ssub.s32 1, %s7
  %s10 = scalar_select 0, %s9, %s7
  $region1: #{tpu_custom_call.1} parent=0
    #allocation2 [shape = 'u8[1024]{0}', space=vmem, size = 0x400, scoped, tag = 'output window, operand 0, single buffered']
    #allocation3 [shape = 's32[1]{0}', space=sflag, size = 0x4, scoped, tag = 'scoped memory for tpu_custom_call.1']
    %11 = vsyncpa [#allocation3], 0
    // Predicated region
    $region2: #{tpu_custom_call.1} parent=1 // pred_check
      _
    $region3: #{tpu_custom_call.1} parent=1 // pred_check_branch
      %13 = sbr.rel (0) target = $region5
    $region4: #{tpu_custom_call.1} parent=1 // pred_region
      _
    $region5: #{tpu_custom_call.1} parent=1 // pred_fallthru
      _
    // Predicated region
    $region6: #{tpu_custom_call.1} parent=1 // pred_check
      _
    $region7: #{tpu_custom_call.1} parent=1 // pred_check_branch
      %15 = sbr.rel (0) target = $region9
    $region8: #{tpu_custom_call.1} parent=1 // pred_region
      _
    $region9: #{tpu_custom_call.1} parent=1 // pred_fallthru
      _
    // Predicated region
    $region10: #{tpu_custom_call.1} parent=1 // pred_check
      _
    $region11: #{tpu_custom_call.1} parent=1 // pred_check_branch
      %17 = sbr.rel (0) target = $region13
    $region12: #{tpu_custom_call.1} parent=1 // pred_region
      _
    $region13: #{tpu_custom_call.1} parent=1 // pred_fallthru
      _
    // Predicated region
    $region14: #{tpu_custom_call.1} parent=1 // pred_check
      _
    $region15: #{tpu_custom_call.1} parent=1 // pred_check_branch
      %19 = sbr.rel (0) target = $region17
    $region16: #{tpu_custom_call.1} parent=1 // pred_region
      _
    $region17: #{tpu_custom_call.1} parent=1 // pred_fallthru
      _
    // Predicated region
    $region18: #{tpu_custom_call.1} parent=1 // pred_check
      _
    $region19: #{tpu_custom_call.1} parent=1 // pred_check_branch
      %21 = sbr.rel (0) target = $region21
    $region20: #{tpu_custom_call.1} parent=1 // pred_region
      _
    $region21: #{tpu_custom_call.1} parent=1 // pred_fallthru
      _
    // Predicated region
    $region22: #{tpu_custom_call.1} parent=1 // pred_check
      _
    $region23: #{tpu_custom_call.1} parent=1 // pred_check_branch
      %23 = sbr.rel (0) target = $region25
    $region24: #{tpu_custom_call.1} parent=1 // pred_region
      _
    $region25: #{tpu_custom_call.1} parent=1 // pred_fallthru
      _
    %v24 = vld [vmem:[%s0] sm:$0xff]
    %v25 = vld [vmem:[%s0 + $0x8] sm:$0xf]
    %v26 = vld [vmem:[%s0 + $0x10] sm:$0xff]
    %v27 = vld [vmem:[%s0 + $0x18] sm:$0xf]
    %v28 = vld [vmem:[%s1] sm:$0x1]
    %v30 = vlaneseq
    %v31 = vshrl.u32 %v30, 7
    %v32 = vsub.s32 0, %v31
    %v33 = vrot.slane %v28, %v32
    %36 = vset.pattern.permute.xlu0 0
    %37 = vperm.xlu0 %36, %v24
    %v38 = vpop.permute.xlu0 %37
    %41 = vset.pattern.permute.xlu0 0
    %42 = vperm.xlu0 %41, %v25
    %v43 = vpop.permute.xlu0 %42
    %46 = vset.pattern.permute.xlu0 0
    %47 = vperm.xlu0 %46, %v26
    %v48 = vpop.permute.xlu0 %47
    %51 = vset.pattern.permute.xlu0 0
    %52 = vperm.xlu0 %51, %v27
    %v53 = vpop.permute.xlu0 %52
    %v55 = vmul.f32 %v33, %v38
    %v56 = vmul.f32 %v33, %v43
    %v57 = vmul.f32 %v33, %v48
    %v58 = vmul.f32 %v33, %v53
    %s59 = scalar_lea.vmem %s1, 1
    %v60 = vld [vmem:[%s59] sm:$0x1]
    %v62 = vlaneseq
    %v63 = vshrl.u32 %v62, 7
    %v64 = vsub.s32 0, %v63
    %v65 = vrot.slane %v60, %v64
    %v67 = vmul.f32 %v65, %v38
    %v68 = vmul.f32 %v65, %v43
    %v69 = vmul.f32 %v65, %v48
    %v70 = vmul.f32 %v65, %v53
    %vm75 = vcmask 1046528
    %v76 = vrot.slane %v67, 1
    %v77 = vrot.slane %v68, 1
    %v78 = vsel %vm75, %v76, %v77
    %v79 = vrot.slane %v69, 1
    %v80 = vrot.slane %v70, 1
    %v81 = vsel %vm75, %v79, %v80
    %v86 = vadd.f32 %v55, %v78
    %v87 = vadd.f32 %v56, %v77
    %v88 = vadd.f32 %v57, %v81
    %v89 = vadd.f32 %v58, %v80
    %s90 = scalar_lea.vmem %s1, 2
    %v91 = vld [vmem:[%s90] sm:$0x1]
    %v93 = vlaneseq
    %v94 = vshrl.u32 %v93, 7
    %v95 = vsub.s32 0, %v94
    %v96 = vrot.slane %v91, %v95
    %v98 = vmul.f32 %v96, %v38
    %v99 = vmul.f32 %v96, %v43
    %v100 = vmul.f32 %v96, %v48
    %v101 = vmul.f32 %v96, %v53
    %vm106 = vcmask 1045504
    %v107 = vrot.slane %v98, 2
    %v108 = vrot.slane %v99, 2
    %v109 = vsel %vm106, %v107, %v108
    %v110 = vrot.slane %v100, 2
    %v111 = vrot.slane %v101, 2
    %v112 = vsel %vm106, %v110, %v111
    %v117 = vadd.f32 %v86, %v109
    %v118 = vadd.f32 %v87, %v108
    %v119 = vadd.f32 %v88, %v112
    %v120 = vadd.f32 %v89, %v111
    %v121 = vld [vmem:[%s2] sm:$0x1]
    %v123 = vlaneseq
    %v124 = vshrl.u32 %v123, 7
    %v125 = vsub.s32 0, %v124
    %v126 = vrot.slane %v121, %v125
    %v128 = vadd.f32 %v117, %v126
    %v129 = vadd.f32 %v118, %v126
    %v130 = vadd.f32 %v119, %v126
    %v131 = vadd.f32 %v120, %v126
    %v132 = vmax.f32 %v128, 0.0
    %v133 = vmax.f32 %v129, 0.0
    %v134 = vmax.f32 %v130, 0.0
    %v135 = vmax.f32 %v131, 0.0
    %v136 = vlaneseq
    %v137 = vshrl.u32 %v136, 7
    %v138 = vadd.s32 %v137, 8
    %vm139 = vcmp.eq.s32.totalorder %v137, 0
    %vm140 = vcmp.eq.s32.totalorder %v138, 0
    %vm141 = vcmp.eq.s32.totalorder %v137, 9
    %vm142 = vcmp.eq.s32.totalorder %v138, 9
    %vm143 = vmor %vm139, %vm141
    %vm144 = vmor %vm140, %vm142
    %v145 = vsel %vm143, 0.0, %v132
    %v146 = vsel %vm144, 0.0, %v133
    %v147 = vsel %vm143, 0.0, %v134
    %v148 = vsel %vm144, 0.0, %v135
    %v153 = vrot.slane %v145, 1
    %v154 = vrot.slane %v146, 1
    %v155 = vsel %vm75, %v153, %v154
    %v156 = vrot.slane %v147, 1
    %v157 = vrot.slane %v148, 1
    %v158 = vsel %vm75, %v156, %v157
    %159 = vrot.lane.b32.xlu0 %v155, 16
    %v160 = vpop.permute.xlu0 %159
    %161 = vrot.lane.b32.xlu0 %v158, 16
    %v162 = vpop.permute.xlu0 %161
    %v165 = vrot.slane %v145, 2
    %v166 = vrot.slane %v146, 2
    %v167 = vsel %vm106, %v165, %v166
    %v168 = vrot.slane %v147, 2
    %v169 = vrot.slane %v148, 2
    %v170 = vsel %vm106, %v168, %v169
    %171 = vrot.lane.b32.xlu0 %v167, 32
    %v172 = vpop.permute.xlu0 %171
    %173 = vrot.lane.b32.xlu0 %v170, 32
    %v174 = vpop.permute.xlu0 %173
    %vm177 = vcmask 130048
    %v178 = vsel %vm177, %v145, %v160
    %v179 = vsel %vm177, %v147, %v162
    %vm180 = vcmask 261120
    %v181 = vsel %vm180, %v178, %v172
    %v182 = vsel %vm180, %v179, %v174
    %v183 = vld [vmem:[%s3] sm:$0xff]
    %v184 = vld [vmem:[%s3 + $0x8] sm:$0xff]
    %v185 = vld [vmem:[%s3 + $0x10] sm:$0xff]
    %v186 = vld [vmem:[%s3 + $0x18] sm:$0xff]
    %v187 = vld [vmem:[%s4] sm:$0x1]
    %v189 = vlaneseq
    %v190 = vshrl.u32 %v189, 7
    %v191 = vsub.s32 0, %v190
    %v192 = vrot.slane %v187, %v191
    %vm194 = vcmask 392192
    %v196 = vsel %vm194, %v181, 0
    %v199 = vsel %vm194, %v183, 0
    %v202 = vsel %vm194, %v184, 0
    %v205 = vsel %vm194, %v185, 0
    %v208 = vsel %vm194, %v186, 0
    %210 = vmatprep.subr.mxu0 0.0
    %211 = vmatpush1.xpose.msra.mxu0 %v199
    %212 = vmatprep.subr.mxu0 0.0
    %213 = vmatpush1.xpose.msra.mxu0 %v202
    %214 = vmatprep.subr.mxu0 0.0
    %215 = vmatpush1.xpose.msra.mxu0 %v205
    %216 = vmatprep.subr.mxu0 0.0
    %217 = vmatpush1.xpose.msra.mxu0 %v208
    %218 = vmatprep.subr.mxu0 0.0
    %219 = vmatpush1.xpose.msra.mxu0 0.0
    %220 = vmatprep.subr.mxu0 0.0
    %221 = vmatpush1.xpose.msra.mxu0 0.0
    %222 = vmatprep.subr.mxu0 0.0
    %223 = vmatpush1.xpose.msra.mxu0 0.0
    %224 = vmatprep.subr.mxu0 0.0
    %225 = vmatpush1.xpose.msra.mxu0 0.0
    %226 = vmatprep.subr.mxu0 0.0
    %227 = vmatpush1.xpose.msra.mxu0 0.0
    %228 = vmatprep.subr.mxu0 0.0
    %229 = vmatpush1.xpose.msra.mxu0 0.0
    %230 = vmatprep.subr.mxu0 0.0
    %231 = vmatpush1.xpose.msra.mxu0 0.0
    %232 = vmatprep.subr.mxu0 0.0
    %233 = vmatpush1.xpose.msra.mxu0 0.0
    %234 = vmatprep.subr.mxu0 0.0
    %235 = vmatpush1.xpose.msra.mxu0 0.0
    %236 = vmatprep.subr.mxu0 0.0
    %237 = vmatpush1.xpose.msra.mxu0 0.0
    %238 = vmatprep.subr.mxu0 0.0
    %239 = vmatpush1.xpose.msra.mxu0 0.0
    %240 = vmatprep.subr.mxu0 0.0
    %241 = vmatpush1.xpose.msra.mxu0 0.0
    %242 = vmatprep.subr.mxu0 0.0
    %243 = vmatpush1.xpose.msra.mxu0 0.0
    %244 = vmatprep.subr.mxu0 0.0
    %245 = vmatpush1.xpose.msra.mxu0 0.0
    %246 = vmatprep.subr.mxu0 0.0
    %247 = vmatpush1.xpose.msra.mxu0 0.0
    %248 = vmatprep.subr.mxu0 0.0
    %249 = vmatpush1.xpose.msra.mxu0 0.0
    %250 = vmatprep.subr.mxu0 0.0
    %251 = vmatpush1.xpose.msra.mxu0 0.0
    %252 = vmatprep.subr.mxu0 0.0
    %253 = vmatpush1.xpose.msra.mxu0 0.0
    %254 = vmatprep.subr.mxu0 0.0
    %255 = vmatpush1.xpose.msra.mxu0 0.0
    %256 = vmatprep.subr.mxu0 0.0
    %257 = vmatpush1.xpose.msra.mxu0 0.0
    %258 = vmatprep.subr.mxu0 0.0
    %259 = vmatpush1.xpose.msra.mxu0 0.0
    %260 = vmatprep.subr.mxu0 0.0
    %261 = vmatpush1.xpose.msra.mxu0 0.0
    %262 = vmatprep.subr.mxu0 0.0
    %263 = vmatpush1.xpose.msra.mxu0 0.0
    %264 = vmatprep.subr.mxu0 0.0
    %265 = vmatpush1.xpose.msra.mxu0 0.0
    %266 = vmatprep.subr.mxu0 0.0
    %267 = vmatpush1.xpose.msra.mxu0 0.0
    %268 = vmatprep.subr.mxu0 0.0
    %269 = vmatpush1.xpose.msra.mxu0 0.0
    %270 = vmatprep.subr.mxu0 0.0
    %271 = vmatpush1.xpose.msra.mxu0 0.0
    %272 = vmatprep.subr.mxu0 0.0
    %273 = vmatpush1.xpose.msra.mxu0 0.0
    %274 = vmatprep.mubr.f32.mxu0 0.0
    %275 = vmatmul.mubr.f32.gmra.mrb[0].mxu0 %v196
    %v276 = vpop.f32.mrb[0].mxu0
    %v277 = vadd.f32 %v192, %v276
    %v278 = vpop.f32.mrb[0].mxu0
    %279 = vdwg.mxu0
    %v281 = vsel %vm194, %v182, 0
    %283 = vmatprep.subr.mxu0 0.0
    %284 = vmatpush1.xpose.msra.mxu0 %v199
    %285 = vmatprep.subr.mxu0 0.0
    %286 = vmatpush1.xpose.msra.mxu0 %v202
    %287 = vmatprep.subr.mxu0 0.0
    %288 = vmatpush1.xpose.msra.mxu0 %v205
    %289 = vmatprep.subr.mxu0 0.0
    %290 = vmatpush1.xpose.msra.mxu0 %v208
    %291 = vmatprep.subr.mxu0 0.0
    %292 = vmatpush1.xpose.msra.mxu0 0.0
    %293 = vmatprep.subr.mxu0 0.0
    %294 = vmatpush1.xpose.msra.mxu0 0.0
    %295 = vmatprep.subr.mxu0 0.0
    %296 = vmatpush1.xpose.msra.mxu0 0.0
    %297 = vmatprep.subr.mxu0 0.0
    %298 = vmatpush1.xpose.msra.mxu0 0.0
    %299 = vmatprep.subr.mxu0 0.0
    %300 = vmatpush1.xpose.msra.mxu0 0.0
    %301 = vmatprep.subr.mxu0 0.0
    %302 = vmatpush1.xpose.msra.mxu0 0.0
    %303 = vmatprep.subr.mxu0 0.0
    %304 = vmatpush1.xpose.msra.mxu0 0.0
    %305 = vmatprep.subr.mxu0 0.0
    %306 = vmatpush1.xpose.msra.mxu0 0.0
    %307 = vmatprep.subr.mxu0 0.0
    %308 = vmatpush1.xpose.msra.mxu0 0.0
    %309 = vmatprep.subr.mxu0 0.0
    %310 = vmatpush1.xpose.msra.mxu0 0.0
    %311 = vmatprep.subr.mxu0 0.0
    %312 = vmatpush1.xpose.msra.mxu0 0.0
    %313 = vmatprep.subr.mxu0 0.0
    %314 = vmatpush1.xpose.msra.mxu0 0.0
    %315 = vmatprep.subr.mxu0 0.0
    %316 = vmatpush1.xpose.msra.mxu0 0.0
    %317 = vmatprep.subr.mxu0 0.0
    %318 = vmatpush1.xpose.msra.mxu0 0.0
    %319 = vmatprep.subr.mxu0 0.0
    %320 = vmatpush1.xpose.msra.mxu0 0.0
    %321 = vmatprep.subr.mxu0 0.0
    %322 = vmatpush1.xpose.msra.mxu0 0.0
    %323 = vmatprep.subr.mxu0 0.0
    %324 = vmatpush1.xpose.msra.mxu0 0.0
    %325 = vmatprep.subr.mxu0 0.0
    %326 = vmatpush1.xpose.msra.mxu0 0.0
    %327 = vmatprep.subr.mxu0 0.0
    %328 = vmatpush1.xpose.msra.mxu0 0.0
    %329 = vmatprep.subr.mxu0 0.0
    %330 = vmatpush1.xpose.msra.mxu0 0.0
    %331 = vmatprep.subr.mxu0 0.0
    %332 = vmatpush1.xpose.msra.mxu0 0.0
    %333 = vmatprep.subr.mxu0 0.0
    %334 = vmatpush1.xpose.msra.mxu0 0.0
    %335 = vmatprep.subr.mxu0 0.0
    %336 = vmatpush1.xpose.msra.mxu0 0.0
    %337 = vmatprep.subr.mxu0 0.0
    %338 = vmatpush1.xpose.msra.mxu0 0.0
    %339 = vmatprep.subr.mxu0 0.0
    %340 = vmatpush1.xpose.msra.mxu0 0.0
    %341 = vmatprep.subr.mxu0 0.0
    %342 = vmatpush1.xpose.msra.mxu0 0.0
    %343 = vmatprep.subr.mxu0 0.0
    %344 = vmatpush1.xpose.msra.mxu0 0.0
    %345 = vmatprep.subr.mxu0 0.0
    %346 = vmatpush1.xpose.msra.mxu0 0.0
    %347 = vmatprep.mubr.f32.mxu0 0.0
    %348 = vmatmul.mubr.f32.gmra.mrb[0].mxu0 %v281
    %v349 = vpop.f32.mrb[0].mxu0
    %v350 = vadd.f32 %v192, %v349
    %v351 = vpop.f32.mrb[0].mxu0
    %352 = vdwg.mxu0
    %v353 = vmax.f32 %v277, 0.0
    %v354 = vmax.f32 %v350, 0.0
    %v357 = vrot.slane %v353, 1
    %v358 = vrot.slane %v354, 1
    %359 = vrot.lane.b32.xlu0 %v357, 32
    %v360 = vpop.permute.xlu0 %359
    %361 = vrot.lane.b32.xlu0 %v358, 32
    %v362 = vpop.permute.xlu0 %361
    %v365 = vrot.slane %v353, 2
    %v366 = vrot.slane %v354, 2
    %367 = vrot.lane.b32.xlu0 %v365, 64
    %v368 = vpop.permute.xlu0 %367
    %369 = vrot.lane.b32.xlu0 %v366, 64
    %v370 = vpop.permute.xlu0 %369
    %v373 = vrot.slane %v353, 3
    %v374 = vrot.slane %v354, 3
    %375 = vrot.lane.b32.xlu0 %v373, 96
    %v376 = vpop.permute.xlu0 %375
    %377 = vrot.lane.b32.xlu0 %v374, 96
    %v378 = vpop.permute.xlu0 %377
    %v381 = vrot.slane %v353, 4
    %v382 = vrot.slane %v354, 4
    %v385 = vrot.slane %v353, 5
    %v386 = vrot.slane %v354, 5
    %387 = vrot.lane.b32.xlu0 %v385, 32
    %v388 = vpop.permute.xlu0 %387
    %389 = vrot.lane.b32.xlu0 %v386, 32
    %v390 = vpop.permute.xlu0 %389
    %v393 = vrot.slane %v353, 6
    %v394 = vrot.slane %v354, 6
    %395 = vrot.lane.b32.xlu0 %v393, 64
    %v396 = vpop.permute.xlu0 %395
    %397 = vrot.lane.b32.xlu0 %v394, 64
    %v398 = vpop.permute.xlu0 %397
    %v401 = vrot.slane %v353, 7
    %v402 = vrot.slane %v354, 7
    %403 = vrot.lane.b32.xlu0 %v401, 96
    %v404 = vpop.permute.xlu0 %403
    %405 = vrot.lane.b32.xlu0 %v402, 96
    %v406 = vpop.permute.xlu0 %405
    %v409 = vsel %vm180, %v353, %v360
    %v410 = vsel %vm180, %v354, %v362
    %vm411 = vcmask 523264
    %v412 = vsel %vm411, %v409, %v368
    %v413 = vsel %vm411, %v410, %v370
    %vm414 = vcmask 785408
    %v415 = vsel %vm414, %v412, %v376
    %v416 = vsel %vm414, %v413, %v378
    %v417 = vsel %vm180, %v381, %v388
    %v418 = vsel %vm180, %v382, %v390
    %v419 = vsel %vm411, %v417, %v396
    %v420 = vsel %vm411, %v418, %v398
    %v421 = vsel %vm414, %v419, %v404
    %v422 = vsel %vm414, %v420, %v406
    %v423 = vld [vmem:[%s5] sm:$0xf]
    %v426 = vunpack.c.l.s4 1983009808
    %v427 = vunpack.c.0.s8 %v426
    %v428 = vlaneseq
    %v429 = vshrl.u32 %v428, 7
    %v430 = vsub.s32 %v427, %v429
    %v431 = vrot.slane %v423, %v430
    %v432 = vcombine.high %v431, %v431
    %435 = vmatprep.subr.mxu0 %v432
    %436 = vmatpush1.xpose.msra.mxu0 %v431
    %437 = vmatprep.subr.mxu0 0.0
    %438 = vmatpush1.xpose.msra.mxu0 0.0
    %439 = vmatprep.subr.mxu0 0.0
    %440 = vmatpush1.xpose.msra.mxu0 0.0
    %441 = vmatprep.subr.mxu0 0.0
    %442 = vmatpush1.xpose.msra.mxu0 0.0
    %443 = vmatprep.subr.mxu0 0.0
    %444 = vmatpush1.xpose.msra.mxu0 0.0
    %445 = vmatprep.subr.mxu0 0.0
    %446 = vmatpush1.xpose.msra.mxu0 0.0
    %447 = vmatprep.subr.mxu0 0.0
    %448 = vmatpush1.xpose.msra.mxu0 0.0
    %449 = vmatprep.subr.mxu0 0.0
    %450 = vmatpush1.xpose.msra.mxu0 0.0
    %451 = vmatprep.subr.mxu0 0.0
    %452 = vmatpush1.xpose.msra.mxu0 0.0
    %453 = vmatprep.subr.mxu0 0.0
    %454 = vmatpush1.xpose.msra.mxu0 0.0
    %455 = vmatprep.subr.mxu0 0.0
    %456 = vmatpush1.xpose.msra.mxu0 0.0
    %457 = vmatprep.subr.mxu0 0.0
    %458 = vmatpush1.xpose.msra.mxu0 0.0
    %459 = vmatprep.subr.mxu0 0.0
    %460 = vmatpush1.xpose.msra.mxu0 0.0
    %461 = vmatprep.subr.mxu0 0.0
    %462 = vmatpush1.xpose.msra.mxu0 0.0
    %463 = vmatprep.subr.mxu0 0.0
    %464 = vmatpush1.xpose.msra.mxu0 0.0
    %465 = vmatprep.subr.mxu0 0.0
    %466 = vmatpush1.xpose.msra.mxu0 0.0
    %467 = vmatprep.subr.mxu0 0.0
    %468 = vmatpush1.xpose.msra.mxu0 0.0
    %469 = vmatprep.subr.mxu0 0.0
    %470 = vmatpush1.xpose.msra.mxu0 0.0
    %471 = vmatprep.subr.mxu0 0.0
    %472 = vmatpush1.xpose.msra.mxu0 0.0
    %473 = vmatprep.subr.mxu0 0.0
    %474 = vmatpush1.xpose.msra.mxu0 0.0
    %475 = vmatprep.subr.mxu0 0.0
    %476 = vmatpush1.xpose.msra.mxu0 0.0
    %477 = vmatprep.subr.mxu0 0.0
    %478 = vmatpush1.xpose.msra.mxu0 0.0
    %479 = vmatprep.subr.mxu0 0.0
    %480 = vmatpush1.xpose.msra.mxu0 0.0
    %481 = vmatprep.subr.mxu0 0.0
    %482 = vmatpush1.xpose.msra.mxu0 0.0
    %483 = vmatprep.subr.mxu0 0.0
    %484 = vmatpush1.xpose.msra.mxu0 0.0
    %485 = vmatprep.subr.mxu0 0.0
    %486 = vmatpush1.xpose.msra.mxu0 0.0
    %487 = vmatprep.subr.mxu0 0.0
    %488 = vmatpush1.xpose.msra.mxu0 0.0
    %489 = vmatprep.subr.mxu0 0.0
    %490 = vmatpush1.xpose.msra.mxu0 0.0
    %491 = vmatprep.subr.mxu0 0.0
    %492 = vmatpush1.xpose.msra.mxu0 0.0
    %493 = vmatprep.subr.mxu0 0.0
    %494 = vmatpush1.xpose.msra.mxu0 0.0
    %495 = vmatprep.subr.mxu0 0.0
    %496 = vmatpush1.xpose.msra.mxu0 0.0
    %497 = vmatprep.subr.mxu0 0.0
    %498 = vmatpush1.xpose.msra.mxu0 0.0
    %499 = vmatprep.mubr.f32.mxu0 %v421
    %500 = vmatmul.mubr.f32.gmra.mrb[0].mxu0 %v415
    %v501 = vpop.f32.mrb[0].mxu0
    %v502 = vadd.f32 0.0, %v501
    %v503 = vpop.f32.mrb[0].mxu0
    %504 = vdwg.mxu0
    %505 = vmatprep.subr.mxu0 %v432
    %506 = vmatpush1.xpose.msra.mxu0 %v431
    %507 = vmatprep.subr.mxu0 0.0
    %508 = vmatpush1.xpose.msra.mxu0 0.0
    %509 = vmatprep.subr.mxu0 0.0
    %510 = vmatpush1.xpose.msra.mxu0 0.0
    %511 = vmatprep.subr.mxu0 0.0
    %512 = vmatpush1.xpose.msra.mxu0 0.0
    %513 = vmatprep.subr.mxu0 0.0
    %514 = vmatpush1.xpose.msra.mxu0 0.0
    %515 = vmatprep.subr.mxu0 0.0
    %516 = vmatpush1.xpose.msra.mxu0 0.0
    %517 = vmatprep.subr.mxu0 0.0
    %518 = vmatpush1.xpose.msra.mxu0 0.0
    %519 = vmatprep.subr.mxu0 0.0
    %520 = vmatpush1.xpose.msra.mxu0 0.0
    %521 = vmatprep.subr.mxu0 0.0
    %522 = vmatpush1.xpose.msra.mxu0 0.0
    %523 = vmatprep.subr.mxu0 0.0
    %524 = vmatpush1.xpose.msra.mxu0 0.0
    %525 = vmatprep.subr.mxu0 0.0
    %526 = vmatpush1.xpose.msra.mxu0 0.0
    %527 = vmatprep.subr.mxu0 0.0
    %528 = vmatpush1.xpose.msra.mxu0 0.0
    %529 = vmatprep.subr.mxu0 0.0
    %530 = vmatpush1.xpose.msra.mxu0 0.0
    %531 = vmatprep.subr.mxu0 0.0
    %532 = vmatpush1.xpose.msra.mxu0 0.0
    %533 = vmatprep.subr.mxu0 0.0
    %534 = vmatpush1.xpose.msra.mxu0 0.0
    %535 = vmatprep.subr.mxu0 0.0
    %536 = vmatpush1.xpose.msra.mxu0 0.0
    %537 = vmatprep.subr.mxu0 0.0
    %538 = vmatpush1.xpose.msra.mxu0 0.0
    %539 = vmatprep.subr.mxu0 0.0
    %540 = vmatpush1.xpose.msra.mxu0 0.0
    %541 = vmatprep.subr.mxu0 0.0
    %542 = vmatpush1.xpose.msra.mxu0 0.0
    %543 = vmatprep.subr.mxu0 0.0
    %544 = vmatpush1.xpose.msra.mxu0 0.0
    %545 = vmatprep.subr.mxu0 0.0
    %546 = vmatpush1.xpose.msra.mxu0 0.0
    %547 = vmatprep.subr.mxu0 0.0
    %548 = vmatpush1.xpose.msra.mxu0 0.0
    %549 = vmatprep.subr.mxu0 0.0
    %550 = vmatpush1.xpose.msra.mxu0 0.0
    %551 = vmatprep.subr.mxu0 0.0
    %552 = vmatpush1.xpose.msra.mxu0 0.0
    %553 = vmatprep.subr.mxu0 0.0
    %554 = vmatpush1.xpose.msra.mxu0 0.0
    %555 = vmatprep.subr.mxu0 0.0
    %556 = vmatpush1.xpose.msra.mxu0 0.0
    %557 = vmatprep.subr.mxu0 0.0
    %558 = vmatpush1.xpose.msra.mxu0 0.0
    %559 = vmatprep.subr.mxu0 0.0
    %560 = vmatpush1.xpose.msra.mxu0 0.0
    %561 = vmatprep.subr.mxu0 0.0
    %562 = vmatpush1.xpose.msra.mxu0 0.0
    %563 = vmatprep.subr.mxu0 0.0
    %564 = vmatpush1.xpose.msra.mxu0 0.0
    %565 = vmatprep.subr.mxu0 0.0
    %566 = vmatpush1.xpose.msra.mxu0 0.0
    %567 = vmatprep.subr.mxu0 0.0
    %568 = vmatpush1.xpose.msra.mxu0 0.0
    %569 = vmatprep.mubr.f32.mxu0 %v422
    %570 = vmatmul.mubr.f32.gmra.mrb[0].mxu0 %v416
    %v571 = vpop.f32.mrb[0].mxu0
    %v572 = vadd.f32 0.0, %v571
    %v573 = vpop.f32.mrb[0].mxu0
    %574 = vdwg.mxu0
    %vm575 = vcmask 8192
    %576 = vst.msk [vmem:[#allocation2] sm:$0x1] %vm575, %v502
    %577 = vst.msk [vmem:[#allocation2 + $0x1] sm:$0x1] %vm575, %v572
    // Predicated region
    $region26: #{tpu_custom_call.1} parent=1 // pred_check
      _
    $region27: #{tpu_custom_call.1} parent=1 // pred_check_branch
      %579 = sbr.rel (0) target = $region29
    $region28: #{tpu_custom_call.1} parent=1 // pred_region
      %s581 = ssub.s32 32, 32
      %582 = vsyncadd [#allocation3], %s581
      %s583 = sshll.u32 [#allocation2], 4
      %s584 = int_to_ptr.vmem [resolvable:$true] %s583
      %589 = dma.vmem_to_hbm [thread:$0]  %s584, 32, %s6, [#allocation3], 16, 16, 1
    $region29: #{tpu_custom_call.1} parent=1 // pred_fallthru
      _
    // Predicated region
    $region30: #{tpu_custom_call.1} parent=1 // pred_check
      _
    $region31: #{tpu_custom_call.1} parent=1 // pred_check_branch
      %591 = sbr.rel (0) target = $region33
    $region32: #{tpu_custom_call.1} parent=1 // pred_region
      %592 = dma.done [#allocation3], 32
    $region33: #{tpu_custom_call.1} parent=1 // pred_fallthru
      _
    %593 = vsyncpa [#allocation3], 1

</llo_original>
